<compile_context>
chip_gen: v6e
topology: v6e:2x2x1
jax: 0.10.0
libtpu: 0.0.40
codegen_flags: <defaults>
</compile_context>

<pallas_src>
import jax
import jax.numpy as jnp
from jax.experimental import pallas as pl
from jax.experimental.pallas import tpu as pltpu

INPUT_DIM = 1
HIDDEN_DIM = 10

LANE_W = 512      # lane (last) axis width per block: multiple of 128 -> lane-dense stores
TILE_ROWS = 1024  # sublane rows per grid step -> (1024, 512) f32 block = 2 MiB per buffer


def mlp_kernel(w1_ref, b1_ref, w2_ref, b2_ref, x_ref, o_ref):
    # w1_ref / b1_ref / w2_ref: (HIDDEN_DIM,) f32 in SMEM; b2_ref: (1,) f32 in SMEM.
    # x_ref / o_ref: (tile_rows, LANE_W) f32 in VMEM, fully dense.
    x = x_ref[...]
    acc = jnp.zeros_like(x)
    # Unrolled hidden dimension: pure VPU work, scalar weights come down the scalar slot.
    for k in range(HIDDEN_DIM):
        acc = acc + w2_ref[k] * jnp.maximum(w1_ref[k] * x + b1_ref[k], 0.0)
    o_ref[...] = acc + b2_ref[0]


@jax.jit
def simple_neural_network(x, w1, b1, w2, b2):
    """Forward pass of SimpleNeuralNetwork: relu(x @ w1.T + b1) @ w2.T + b2.

    Accepts PyTorch-layout parameters:
      x : (B, 1) f32
      w1: (HIDDEN_DIM, INPUT_DIM) f32   b1: (HIDDEN_DIM,) f32
      w2: (1, HIDDEN_DIM) f32           b2: (1,) f32
    Returns (B, 1) f32.
    """
    B = x.shape[0]
    x_flat = x.reshape(-1)

    # View the batch as a dense (rows, LANE_W) slab; pad only up to the next 512.
    b_pad = pl.cdiv(B, LANE_W) * LANE_W
    rows = b_pad // LANE_W
    x2d = jnp.pad(x_flat, (0, b_pad - B)).reshape(rows, LANE_W)

    # Full-array block for small batches; fixed (8,128)-aligned tile for large ones.
    tile_rows = rows if rows < TILE_ROWS else TILE_ROWS
    grid = (pl.cdiv(rows, tile_rows),)

    out2d = pl.pallas_call(
        mlp_kernel,
        out_shape=jax.ShapeDtypeStruct((rows, LANE_W), jnp.float32),
        grid_spec=pltpu.PrefetchScalarGridSpec(
            num_scalar_prefetch=0,
            grid=grid,
            in_specs=[
                pl.BlockSpec(memory_space=pltpu.MemorySpace.SMEM),     # w1 (10,)
                pl.BlockSpec(memory_space=pltpu.MemorySpace.SMEM),     # b1 (10,)
                pl.BlockSpec(memory_space=pltpu.MemorySpace.SMEM),     # w2 (10,)
                pl.BlockSpec(memory_space=pltpu.MemorySpace.SMEM),     # b2 (1,)
                pl.BlockSpec((tile_rows, LANE_W), lambda i: (i, 0)),   # x slab (moving)
            ],
            out_specs=pl.BlockSpec((tile_rows, LANE_W), lambda i: (i, 0)),
        ),
        compiler_params=pltpu.CompilerParams(
            dimension_semantics=("parallel",),  # v7x: shard row tiles across both TCs
        ),
    )(
        w1.reshape(-1).astype(jnp.float32),
        b1.reshape(-1).astype(jnp.float32),
        w2.reshape(-1).astype(jnp.float32),
        b2.reshape(-1).astype(jnp.float32),
        x2d,
    )

    # Back to the PyTorch-facing (B, 1); the padded tail (garbage values) is dropped.
    return out2d.reshape(-1)[:B].reshape(B, 1)


if __name__ == "__main__":
    key = jax.random.PRNGKey(0)
    kx, k1, k2, k3, k4 = jax.random.split(key, 5)

    batch = 8  # tiny demo shape; the kernel is sized for large batches
    x = jax.random.normal(kx, (batch, INPUT_DIM), dtype=jnp.float32)

    # PyTorch nn.Linear default init bounds, PyTorch layouts.
    bound1 = 1.0 / (INPUT_DIM ** 0.5)
    bound2 = 1.0 / (HIDDEN_DIM ** 0.5)
    w1 = jax.random.uniform(k1, (HIDDEN_DIM, INPUT_DIM), jnp.float32, -bound1, bound1)
    b1 = jax.random.uniform(k2, (HIDDEN_DIM,), jnp.float32, -bound1, bound1)
    w2 = jax.random.uniform(k3, (1, HIDDEN_DIM), jnp.float32, -bound2, bound2)
    b2 = jax.random.uniform(k4, (1,), jnp.float32, -bound2, bound2)

    out = jax.block_until_ready(simple_neural_network(x, w1, b1, w2, b2))

    # Pure-JAX reference of the same forward pass.
    hidden = jnp.maximum(x @ w1.T + b1, 0.0)   # (B, H)
    ref = hidden @ w2.T + b2                   # (B, 1)

    assert out.shape == (batch, 1), out.shape
    assert jnp.allclose(out, ref, atol=1e-5, rtol=1e-5), (out, ref)

    print("KERNEL_OK")
</pallas_src>

<mosaic_0001>
module attributes {stable_mosaic.version = 11 : i64} {
  func.func @mlp_kernel(%arg0: i32, %arg1: memref<10xf32, #tpu.memory_space<smem>>, %arg2: memref<10xf32, #tpu.memory_space<smem>>, %arg3: memref<10xf32, #tpu.memory_space<smem>>, %arg4: memref<1xf32, #tpu.memory_space<smem>>, %arg5: memref<1x512xf32, #tpu.memory_space<vmem>>, %arg6: memref<1x512xf32, #tpu.memory_space<vmem>>) attributes {dimension_semantics = [#tpu.dimension_semantics<parallel>], iteration_bounds = array<i64: 1>, scalar_prefetch = 0 : i64, scratch_operands = 0 : i64, tpu.core_type = #tpu.core_type<tc>, window_params = [{transform_indices = @transform_0, window_bounds = array<i64: 10>}, {transform_indices = @transform_1, window_bounds = array<i64: 10>}, {transform_indices = @transform_2, window_bounds = array<i64: 10>}, {transform_indices = @transform_3, window_bounds = array<i64: 1>}, {transform_indices = @transform_4, window_bounds = array<i64: 1, 512>}, {transform_indices = @transform_5, window_bounds = array<i64: 1, 512>}]} {
    %c0 = arith.constant 0 : index
    %c0_0 = arith.constant 0 : index
    %0 = vector.load %arg5[%c0, %c0_0] : memref<1x512xf32, #tpu.memory_space<vmem>>, vector<1x512xf32>
    %cst = arith.constant 0.000000e+00 : f32
    %1 = vector.broadcast %cst : f32 to vector<1x512xf32>
    %c0_1 = arith.constant 0 : index
    %2 = memref.load %arg3[%c0_1] : memref<10xf32, #tpu.memory_space<smem>>
    %c0_2 = arith.constant 0 : index
    %3 = memref.load %arg1[%c0_2] : memref<10xf32, #tpu.memory_space<smem>>
    %4 = vector.broadcast %3 : f32 to vector<1x512xf32>
    %5 = arith.mulf %4, %0 : vector<1x512xf32>
    %c0_3 = arith.constant 0 : index
    %6 = memref.load %arg2[%c0_3] : memref<10xf32, #tpu.memory_space<smem>>
    %7 = vector.broadcast %6 : f32 to vector<1x512xf32>
    %8 = arith.addf %5, %7 : vector<1x512xf32>
    %cst_4 = arith.constant 0.000000e+00 : f32
    %9 = vector.broadcast %cst_4 : f32 to vector<1x512xf32>
    %10 = arith.maximumf %8, %9 : vector<1x512xf32>
    %11 = vector.broadcast %2 : f32 to vector<1x512xf32>
    %12 = arith.mulf %11, %10 : vector<1x512xf32>
    %13 = arith.addf %1, %12 : vector<1x512xf32>
    %c1 = arith.constant 1 : index
    %14 = memref.load %arg3[%c1] : memref<10xf32, #tpu.memory_space<smem>>
    %c1_5 = arith.constant 1 : index
    %15 = memref.load %arg1[%c1_5] : memref<10xf32, #tpu.memory_space<smem>>
    %16 = vector.broadcast %15 : f32 to vector<1x512xf32>
    %17 = arith.mulf %16, %0 : vector<1x512xf32>
    %c1_6 = arith.constant 1 : index
    %18 = memref.load %arg2[%c1_6] : memref<10xf32, #tpu.memory_space<smem>>
    %19 = vector.broadcast %18 : f32 to vector<1x512xf32>
    %20 = arith.addf %17, %19 : vector<1x512xf32>
    %cst_7 = arith.constant 0.000000e+00 : f32
    %21 = vector.broadcast %cst_7 : f32 to vector<1x512xf32>
    %22 = arith.maximumf %20, %21 : vector<1x512xf32>
    %23 = vector.broadcast %14 : f32 to vector<1x512xf32>
    %24 = arith.mulf %23, %22 : vector<1x512xf32>
    %25 = arith.addf %13, %24 : vector<1x512xf32>
    %c2 = arith.constant 2 : index
    %26 = memref.load %arg3[%c2] : memref<10xf32, #tpu.memory_space<smem>>
    %c2_8 = arith.constant 2 : index
    %27 = memref.load %arg1[%c2_8] : memref<10xf32, #tpu.memory_space<smem>>
    %28 = vector.broadcast %27 : f32 to vector<1x512xf32>
    %29 = arith.mulf %28, %0 : vector<1x512xf32>
    %c2_9 = arith.constant 2 : index
    %30 = memref.load %arg2[%c2_9] : memref<10xf32, #tpu.memory_space<smem>>
    %31 = vector.broadcast %30 : f32 to vector<1x512xf32>
    %32 = arith.addf %29, %31 : vector<1x512xf32>
    %cst_10 = arith.constant 0.000000e+00 : f32
    %33 = vector.broadcast %cst_10 : f32 to vector<1x512xf32>
    %34 = arith.maximumf %32, %33 : vector<1x512xf32>
    %35 = vector.broadcast %26 : f32 to vector<1x512xf32>
    %36 = arith.mulf %35, %34 : vector<1x512xf32>
    %37 = arith.addf %25, %36 : vector<1x512xf32>
    %c3 = arith.constant 3 : index
    %38 = memref.load %arg3[%c3] : memref<10xf32, #tpu.memory_space<smem>>
    %c3_11 = arith.constant 3 : index
    %39 = memref.load %arg1[%c3_11] : memref<10xf32, #tpu.memory_space<smem>>
    %40 = vector.broadcast %39 : f32 to vector<1x512xf32>
    %41 = arith.mulf %40, %0 : vector<1x512xf32>
    %c3_12 = arith.constant 3 : index
    %42 = memref.load %arg2[%c3_12] : memref<10xf32, #tpu.memory_space<smem>>
    %43 = vector.broadcast %42 : f32 to vector<1x512xf32>
    %44 = arith.addf %41, %43 : vector<1x512xf32>
    %cst_13 = arith.constant 0.000000e+00 : f32
    %45 = vector.broadcast %cst_13 : f32 to vector<1x512xf32>
    %46 = arith.maximumf %44, %45 : vector<1x512xf32>
    %47 = vector.broadcast %38 : f32 to vector<1x512xf32>
    %48 = arith.mulf %47, %46 : vector<1x512xf32>
    %49 = arith.addf %37, %48 : vector<1x512xf32>
    %c4 = arith.constant 4 : index
    %50 = memref.load %arg3[%c4] : memref<10xf32, #tpu.memory_space<smem>>
    %c4_14 = arith.constant 4 : index
    %51 = memref.load %arg1[%c4_14] : memref<10xf32, #tpu.memory_space<smem>>
    %52 = vector.broadcast %51 : f32 to vector<1x512xf32>
    %53 = arith.mulf %52, %0 : vector<1x512xf32>
    %c4_15 = arith.constant 4 : index
    %54 = memref.load %arg2[%c4_15] : memref<10xf32, #tpu.memory_space<smem>>
    %55 = vector.broadcast %54 : f32 to vector<1x512xf32>
    %56 = arith.addf %53, %55 : vector<1x512xf32>
    %cst_16 = arith.constant 0.000000e+00 : f32
    %57 = vector.broadcast %cst_16 : f32 to vector<1x512xf32>
    %58 = arith.maximumf %56, %57 : vector<1x512xf32>
    %59 = vector.broadcast %50 : f32 to vector<1x512xf32>
    %60 = arith.mulf %59, %58 : vector<1x512xf32>
    %61 = arith.addf %49, %60 : vector<1x512xf32>
    %c5 = arith.constant 5 : index
    %62 = memref.load %arg3[%c5] : memref<10xf32, #tpu.memory_space<smem>>
    %c5_17 = arith.constant 5 : index
    %63 = memref.load %arg1[%c5_17] : memref<10xf32, #tpu.memory_space<smem>>
    %64 = vector.broadcast %63 : f32 to vector<1x512xf32>
    %65 = arith.mulf %64, %0 : vector<1x512xf32>
    %c5_18 = arith.constant 5 : index
    %66 = memref.load %arg2[%c5_18] : memref<10xf32, #tpu.memory_space<smem>>
    %67 = vector.broadcast %66 : f32 to vector<1x512xf32>
    %68 = arith.addf %65, %67 : vector<1x512xf32>
    %cst_19 = arith.constant 0.000000e+00 : f32
    %69 = vector.broadcast %cst_19 : f32 to vector<1x512xf32>
    %70 = arith.maximumf %68, %69 : vector<1x512xf32>
    %71 = vector.broadcast %62 : f32 to vector<1x512xf32>
    %72 = arith.mulf %71, %70 : vector<1x512xf32>
    %73 = arith.addf %61, %72 : vector<1x512xf32>
    %c6 = arith.constant 6 : index
    %74 = memref.load %arg3[%c6] : memref<10xf32, #tpu.memory_space<smem>>
    %c6_20 = arith.constant 6 : index
    %75 = memref.load %arg1[%c6_20] : memref<10xf32, #tpu.memory_space<smem>>
    %76 = vector.broadcast %75 : f32 to vector<1x512xf32>
    %77 = arith.mulf %76, %0 : vector<1x512xf32>
    %c6_21 = arith.constant 6 : index
    %78 = memref.load %arg2[%c6_21] : memref<10xf32, #tpu.memory_space<smem>>
    %79 = vector.broadcast %78 : f32 to vector<1x512xf32>
    %80 = arith.addf %77, %79 : vector<1x512xf32>
    %cst_22 = arith.constant 0.000000e+00 : f32
    %81 = vector.broadcast %cst_22 : f32 to vector<1x512xf32>
    %82 = arith.maximumf %80, %81 : vector<1x512xf32>
    %83 = vector.broadcast %74 : f32 to vector<1x512xf32>
    %84 = arith.mulf %83, %82 : vector<1x512xf32>
    %85 = arith.addf %73, %84 : vector<1x512xf32>
    %c7 = arith.constant 7 : index
    %86 = memref.load %arg3[%c7] : memref<10xf32, #tpu.memory_space<smem>>
    %c7_23 = arith.constant 7 : index
    %87 = memref.load %arg1[%c7_23] : memref<10xf32, #tpu.memory_space<smem>>
    %88 = vector.broadcast %87 : f32 to vector<1x512xf32>
    %89 = arith.mulf %88, %0 : vector<1x512xf32>
    %c7_24 = arith.constant 7 : index
    %90 = memref.load %arg2[%c7_24] : memref<10xf32, #tpu.memory_space<smem>>
    %91 = vector.broadcast %90 : f32 to vector<1x512xf32>
    %92 = arith.addf %89, %91 : vector<1x512xf32>
    %cst_25 = arith.constant 0.000000e+00 : f32
    %93 = vector.broadcast %cst_25 : f32 to vector<1x512xf32>
    %94 = arith.maximumf %92, %93 : vector<1x512xf32>
    %95 = vector.broadcast %86 : f32 to vector<1x512xf32>
    %96 = arith.mulf %95, %94 : vector<1x512xf32>
    %97 = arith.addf %85, %96 : vector<1x512xf32>
    %c8 = arith.constant 8 : index
    %98 = memref.load %arg3[%c8] : memref<10xf32, #tpu.memory_space<smem>>
    %c8_26 = arith.constant 8 : index
    %99 = memref.load %arg1[%c8_26] : memref<10xf32, #tpu.memory_space<smem>>
    %100 = vector.broadcast %99 : f32 to vector<1x512xf32>
    %101 = arith.mulf %100, %0 : vector<1x512xf32>
    %c8_27 = arith.constant 8 : index
    %102 = memref.load %arg2[%c8_27] : memref<10xf32, #tpu.memory_space<smem>>
    %103 = vector.broadcast %102 : f32 to vector<1x512xf32>
    %104 = arith.addf %101, %103 : vector<1x512xf32>
    %cst_28 = arith.constant 0.000000e+00 : f32
    %105 = vector.broadcast %cst_28 : f32 to vector<1x512xf32>
    %106 = arith.maximumf %104, %105 : vector<1x512xf32>
    %107 = vector.broadcast %98 : f32 to vector<1x512xf32>
    %108 = arith.mulf %107, %106 : vector<1x512xf32>
    %109 = arith.addf %97, %108 : vector<1x512xf32>
    %c9 = arith.constant 9 : index
    %110 = memref.load %arg3[%c9] : memref<10xf32, #tpu.memory_space<smem>>
    %c9_29 = arith.constant 9 : index
    %111 = memref.load %arg1[%c9_29] : memref<10xf32, #tpu.memory_space<smem>>
    %112 = vector.broadcast %111 : f32 to vector<1x512xf32>
    %113 = arith.mulf %112, %0 : vector<1x512xf32>
    %c9_30 = arith.constant 9 : index
    %114 = memref.load %arg2[%c9_30] : memref<10xf32, #tpu.memory_space<smem>>
    %115 = vector.broadcast %114 : f32 to vector<1x512xf32>
    %116 = arith.addf %113, %115 : vector<1x512xf32>
    %cst_31 = arith.constant 0.000000e+00 : f32
    %117 = vector.broadcast %cst_31 : f32 to vector<1x512xf32>
    %118 = arith.maximumf %116, %117 : vector<1x512xf32>
    %119 = vector.broadcast %110 : f32 to vector<1x512xf32>
    %120 = arith.mulf %119, %118 : vector<1x512xf32>
    %121 = arith.addf %109, %120 : vector<1x512xf32>
    %c0_32 = arith.constant 0 : index
    %122 = memref.load %arg4[%c0_32] : memref<1xf32, #tpu.memory_space<smem>>
    %123 = vector.broadcast %122 : f32 to vector<1x512xf32>
    %124 = arith.addf %121, %123 : vector<1x512xf32>
    %c0_33 = arith.constant 0 : index
    %c0_34 = arith.constant 0 : index
    %125 = vector.load %arg6[%c0_33, %c0_34] : memref<1x512xf32, #tpu.memory_space<vmem>>, vector<1x512xf32>
    tpu.vector_store %arg6[%c0_33, %c0_34], %124 {strides = array<i32>} : memref<1x512xf32, #tpu.memory_space<vmem>>, vector<1x512xf32>,
    return
  }
  func.func @transform_0(%arg0: i32) -> i32 {
    %c0_i32 = arith.constant 0 : i32
    %c0_i32_0 = arith.constant 0 : i32
    return %c0_i32 : i32
  }
  func.func @transform_1(%arg0: i32) -> i32 {
    %c0_i32 = arith.constant 0 : i32
    %c0_i32_0 = arith.constant 0 : i32
    return %c0_i32 : i32
  }
  func.func @transform_2(%arg0: i32) -> i32 {
    %c0_i32 = arith.constant 0 : i32
    %c0_i32_0 = arith.constant 0 : i32
    return %c0_i32 : i32
  }
  func.func @transform_3(%arg0: i32) -> i32 {
    %c0_i32 = arith.constant 0 : i32
    %c0_i32_0 = arith.constant 0 : i32
    return %c0_i32 : i32
  }
  func.func @transform_4(%arg0: i32) -> (i32, i32) {
    %c0_i32 = arith.constant 0 : i32
    %c0_i32_0 = arith.constant 0 : i32
    return %arg0, %c0_i32 : i32, i32
  }
  func.func @transform_5(%arg0: i32) -> (i32, i32) {
    %c0_i32 = arith.constant 0 : i32
    %c0_i32_0 = arith.constant 0 : i32
    return %arg0, %c0_i32 : i32, i32
  }
}

</mosaic_0001>

<llo_original>
// kernel: simple_neural_network.1
$region0: #{simple_neural_network.1}
  #allocation0 [shape = 'u32[]', space=smem, size = 0x4, offset = 0x4, fixed_abs, tag = 'smem constant byte address 0x4 - core index']
  #allocation1 [shape = 'u32[144,128]{1,0:T(1,128)}', space=vmem, size = 0x12000, scoped, tag = 'internal scratch']
  #allocation2 [shape = 'f32[1]{0:T(128)S(6)}', space=smem, size = 0x200, scoped, tag = 'scoped memory for simple_neural_network.1']
  %s0 = inlined_call_operand.vmem [shape: f32[10], index: 0, kind: input, shape index: {}]
  %s1 = inlined_call_operand.vmem [shape: f32[10], index: 1, kind: input, shape index: {}]
  %s2 = inlined_call_operand.vmem [shape: f32[10], index: 2, kind: input, shape index: {}]
  %s3 = inlined_call_operand.<no memory space> [shape: f32[1], index: 3, kind: input, shape index: {}]
  %s4 = inlined_call_operand.vmem [shape: f32[1,512], index: 4, kind: input, shape index: {}]
  %s5 = inlined_call_operand.vmem [shape: f32[1,512], index: 5, kind: output, shape index: {}]
  %s6 = sld [smem:[#allocation0]]
  $region42: #{simple_neural_network.1} parent=0
    _
  %s8 = ssub.s32 1, %s6
  %s9 = scalar_select 0, %s8, %s6
  %10 = sst [smem:[#allocation2]] %s3
  $region1: #{simple_neural_network.1} parent=0
    #allocation3 [shape = 'u8[512]{0}', space=smem, size = 0x200, scoped, tag = 'input window, operand 0, single buffered']
    #allocation4 [shape = 's32[1]{0}', space=sflag, size = 0x4, scoped, tag = 'scoped memory for simple_neural_network.1']
    #allocation5 [shape = 'u8[512]{0}', space=smem, size = 0x200, scoped, tag = 'input window, operand 1, single buffered']
    #allocation6 [shape = 's32[1]{0}', space=sflag, size = 0x4, scoped, tag = 'scoped memory for simple_neural_network.1']
    #allocation7 [shape = 'u8[512]{0}', space=smem, size = 0x200, scoped, tag = 'input window, operand 2, single buffered']
    %11 = vsyncpa [#allocation4], 0
    %12 = vsyncpa [#allocation6], 0
    // Predicated region
    $region2: #{simple_neural_network.1} parent=1 // pred_check
      _
    $region3: #{simple_neural_network.1} parent=1 // pred_check_branch
      %14 = sbr.rel (0) target = $region5
    $region4: #{simple_neural_network.1} parent=1 // pred_region
      %s16 = ssub.s32 16, 16
      %17 = vsyncadd [#allocation4], %s16
      %s19 = sshll.u32 %s0, 4
      %s20 = int_to_ptr.vmem [resolvable:$true] %s19
      %22 = dma.vmem_to_smem %s20, 16, [#allocation3], [#allocation4]
    $region5: #{simple_neural_network.1} parent=1 // pred_fallthru
      _
    // Predicated region
    $region6: #{simple_neural_network.1} parent=1 // pred_check
      _
    $region7: #{simple_neural_network.1} parent=1 // pred_check_branch
      %24 = sbr.rel (0) target = $region9
    $region8: #{simple_neural_network.1} parent=1 // pred_region
      %s26 = ssub.s32 16, 16
      %27 = vsyncadd [#allocation6], %s26
      %s29 = sshll.u32 %s1, 4
      %s30 = int_to_ptr.vmem [resolvable:$true] %s29
      %32 = dma.vmem_to_smem %s30, 16, [#allocation5], [#allocation6]
    $region9: #{simple_neural_network.1} parent=1 // pred_fallthru
      _
    // Predicated region
    $region10: #{simple_neural_network.1} parent=1 // pred_check
      _
    $region11: #{simple_neural_network.1} parent=1 // pred_check_branch
      %34 = sbr.rel (0) target = $region13
    $region12: #{simple_neural_network.1} parent=1 // pred_region
      %s36 = ssub.s32 16, 16
      %37 = vsyncadd [#allocation6], %s36
      %s39 = sshll.u32 %s2, 4
      %s40 = int_to_ptr.vmem [resolvable:$true] %s39
      %42 = dma.vmem_to_smem %s40, 16, [#allocation7], [#allocation6]
    $region13: #{simple_neural_network.1} parent=1 // pred_fallthru
      _
    // Predicated region
    $region14: #{simple_neural_network.1} parent=1 // pred_check
      _
    $region15: #{simple_neural_network.1} parent=1 // pred_check_branch
      %44 = sbr.rel (0) target = $region17
    $region16: #{simple_neural_network.1} parent=1 // pred_region
      _
    $region17: #{simple_neural_network.1} parent=1 // pred_fallthru
      _
    // Predicated region
    $region18: #{simple_neural_network.1} parent=1 // pred_check
      _
    $region19: #{simple_neural_network.1} parent=1 // pred_check_branch
      %46 = sbr.rel (0) target = $region21
    $region20: #{simple_neural_network.1} parent=1 // pred_region
      _
    $region21: #{simple_neural_network.1} parent=1 // pred_fallthru
      _
    // Predicated region
    $region22: #{simple_neural_network.1} parent=1 // pred_check
      _
    $region23: #{simple_neural_network.1} parent=1 // pred_check_branch
      %48 = sbr.rel (0) target = $region25
    $region24: #{simple_neural_network.1} parent=1 // pred_region
      %49 = dma.done [#allocation4], 16
    $region25: #{simple_neural_network.1} parent=1 // pred_fallthru
      _
    // Predicated region
    $region26: #{simple_neural_network.1} parent=1 // pred_check
      _
    $region27: #{simple_neural_network.1} parent=1 // pred_check_branch
      %51 = sbr.rel (0) target = $region29
    $region28: #{simple_neural_network.1} parent=1 // pred_region
      %52 = dma.done [#allocation6], 16
    $region29: #{simple_neural_network.1} parent=1 // pred_fallthru
      _
    // Predicated region
    $region30: #{simple_neural_network.1} parent=1 // pred_check
      _
    $region31: #{simple_neural_network.1} parent=1 // pred_check_branch
      %54 = sbr.rel (0) target = $region33
    $region32: #{simple_neural_network.1} parent=1 // pred_region
      %55 = dma.done [#allocation6], 16
    $region33: #{simple_neural_network.1} parent=1 // pred_fallthru
      _
    %56 = sfence
    %v57 = vld [vmem:[%s4] sm:$0xf]
    %s58 = sld [smem:[#allocation7]]
    %s59 = sld [smem:[#allocation3]]
    %v60 = vstv %s59
    %v61 = vmul.f32 %v60, %v57
    %s62 = sld [smem:[#allocation5]]
    %v63 = vstv %s62
    %v64 = vadd.f32 %v61, %v63
    %v65 = vmax.f32 %v64, 0.0
    %v66 = vstv %s58
    %v67 = vmul.f32 %v66, %v65
    %v68 = vadd.f32 %v67, 0.0
    %s69 = sld [smem:[#allocation7 + $0x1]]
    %s70 = sld [smem:[#allocation3 + $0x1]]
    %v71 = vstv %s70
    %v72 = vmul.f32 %v71, %v57
    %s73 = sld [smem:[#allocation5 + $0x1]]
    %v74 = vstv %s73
    %v75 = vadd.f32 %v72, %v74
    %v76 = vmax.f32 %v75, 0.0
    %v77 = vstv %s69
    %v78 = vmul.f32 %v77, %v76
    %v79 = vadd.f32 %v68, %v78
    %s80 = sld [smem:[#allocation7 + $0x2]]
    %s81 = sld [smem:[#allocation3 + $0x2]]
    %v82 = vstv %s81
    %v83 = vmul.f32 %v82, %v57
    %s84 = sld [smem:[#allocation5 + $0x2]]
    %v85 = vstv %s84
    %v86 = vadd.f32 %v83, %v85
    %v87 = vmax.f32 %v86, 0.0
    %v88 = vstv %s80
    %v89 = vmul.f32 %v88, %v87
    %v90 = vadd.f32 %v79, %v89
    %s91 = sld [smem:[#allocation7 + $0x3]]
    %s92 = sld [smem:[#allocation3 + $0x3]]
    %v93 = vstv %s92
    %v94 = vmul.f32 %v93, %v57
    %s95 = sld [smem:[#allocation5 + $0x3]]
    %v96 = vstv %s95
    %v97 = vadd.f32 %v94, %v96
    %v98 = vmax.f32 %v97, 0.0
    %v99 = vstv %s91
    %v100 = vmul.f32 %v99, %v98
    %v101 = vadd.f32 %v90, %v100
    %s102 = sld [smem:[#allocation7 + $0x4]]
    %s103 = sld [smem:[#allocation3 + $0x4]]
    %v104 = vstv %s103
    %v105 = vmul.f32 %v104, %v57
    %s106 = sld [smem:[#allocation5 + $0x4]]
    %v107 = vstv %s106
    %v108 = vadd.f32 %v105, %v107
    %v109 = vmax.f32 %v108, 0.0
    %v110 = vstv %s102
    %v111 = vmul.f32 %v110, %v109
    %v112 = vadd.f32 %v101, %v111
    %s113 = sld [smem:[#allocation7 + $0x5]]
    %s114 = sld [smem:[#allocation3 + $0x5]]
    %v115 = vstv %s114
    %v116 = vmul.f32 %v115, %v57
    %s117 = sld [smem:[#allocation5 + $0x5]]
    %v118 = vstv %s117
    %v119 = vadd.f32 %v116, %v118
    %v120 = vmax.f32 %v119, 0.0
    %v121 = vstv %s113
    %v122 = vmul.f32 %v121, %v120
    %v123 = vadd.f32 %v112, %v122
    %s124 = sld [smem:[#allocation7 + $0x6]]
    %s125 = sld [smem:[#allocation3 + $0x6]]
    %v126 = vstv %s125
    %v127 = vmul.f32 %v126, %v57
    %s128 = sld [smem:[#allocation5 + $0x6]]
    %v129 = vstv %s128
    %v130 = vadd.f32 %v127, %v129
    %v131 = vmax.f32 %v130, 0.0
    %v132 = vstv %s124
    %v133 = vmul.f32 %v132, %v131
    %v134 = vadd.f32 %v123, %v133
    %s135 = sld [smem:[#allocation7 + $0x7]]
    %s136 = sld [smem:[#allocation3 + $0x7]]
    %v137 = vstv %s136
    %v138 = vmul.f32 %v137, %v57
    %s139 = sld [smem:[#allocation5 + $0x7]]
    %v140 = vstv %s139
    %v141 = vadd.f32 %v138, %v140
    %v142 = vmax.f32 %v141, 0.0
    %v143 = vstv %s135
    %v144 = vmul.f32 %v143, %v142
    %v145 = vadd.f32 %v134, %v144
    %s146 = sld [smem:[#allocation7 + $0x8]]
    %s147 = sld [smem:[#allocation3 + $0x8]]
    %v148 = vstv %s147
    %v149 = vmul.f32 %v148, %v57
    %s150 = sld [smem:[#allocation5 + $0x8]]
    %v151 = vstv %s150
    %v152 = vadd.f32 %v149, %v151
    %v153 = vmax.f32 %v152, 0.0
    %v154 = vstv %s146
    %v155 = vmul.f32 %v154, %v153
    %v156 = vadd.f32 %v145, %v155
    %s157 = sld [smem:[#allocation7 + $0x9]]
    %s158 = sld [smem:[#allocation3 + $0x9]]
    %v159 = vstv %s158
    %v160 = vmul.f32 %v159, %v57
    %s161 = sld [smem:[#allocation5 + $0x9]]
    %v162 = vstv %s161
    %v163 = vadd.f32 %v160, %v162
    %v164 = vmax.f32 %v163, 0.0
    %v165 = vstv %s157
    %v166 = vmul.f32 %v165, %v164
    %v167 = vadd.f32 %v156, %v166
    %s168 = sld [smem:[#allocation2]]
    %v169 = vstv %s168
    %v170 = vadd.f32 %v167, %v169
    %v171 = vlaneseq
    %vm172 = vcmp.ge.s32.totalorder %v171, 0
    %vm173 = vcmp.lt.s32.totalorder %v171, 512
    %vm174 = vmand %vm172, %vm173
    %175 = vst.msk [vmem:[%s5] sm:$0xf] %vm174, %v170
    // Predicated region
    $region34: #{simple_neural_network.1} parent=1 // pred_check
      _
    $region35: #{simple_neural_network.1} parent=1 // pred_check_branch
      %177 = sbr.rel (0) target = $region37
    $region36: #{simple_neural_network.1} parent=1 // pred_region
      _
    $region37: #{simple_neural_network.1} parent=1 // pred_fallthru
      _
    // Predicated region
    $region38: #{simple_neural_network.1} parent=1 // pred_check
      _
    $region39: #{simple_neural_network.1} parent=1 // pred_check_branch
      %179 = sbr.rel (0) target = $region41
    $region40: #{simple_neural_network.1} parent=1 // pred_region
      _
    $region41: #{simple_neural_network.1} parent=1 // pred_fallthru
      _
    %180 = vsyncpa [#allocation4], 1
    %181 = vsyncpa [#allocation6], 1

</llo_original>
